<compile_context>
chip_gen: v7x
topology: tpu7x:2x2x1
jax: 0.10.0
libtpu: 0.0.40
codegen_flags: <defaults>
</compile_context>

<pallas_src>
import functools

import jax
import jax.numpy as jnp
from jax.experimental import pallas as pl
from jax.experimental.pallas import tpu as pltpu


def _wce_kernel(x_ref, tgt_ref, wt_ref, num_ref, *, n_valid: int):
    """One (tile_n, C) logits block -> accumulate sum_i w[y_i] * (lse_i - x_i[y_i])."""
    t = pl.program_id(0)
    tile_n = x_ref.shape[0]

    @pl.when(t == 0)
    def _():
        num_ref[...] = jnp.zeros(num_ref.shape, num_ref.dtype)

    x = x_ref[...].astype(jnp.float32)      # (TN, C)  classes on the lane axis
    tgt = tgt_ref[...]                      # (TN, 1)  int32 targets
    wt = wt_ref[...]                        # (TN, 1)  f32 per-sample weight w[y_i]

    # numerically-stable log-sum-exp over the class (lane) axis, all in f32
    m = jnp.max(x, axis=1, keepdims=True)                               # (TN, 1)
    lse = m + jnp.log(jnp.sum(jnp.exp(x - m), axis=1, keepdims=True))   # (TN, 1)

    # select-based gather of the target logit (no float one-hot / matmul)
    cls = jax.lax.broadcasted_iota(jnp.int32, x.shape, 1)               # (TN, C)
    logit_t = jnp.sum(jnp.where(cls == tgt, x, 0.0), axis=1, keepdims=True)

    # ragged-tail mask: rows past N contribute nothing (jnp.where select, so any
    # garbage/NaN in the unpadded partial final block is discarded, not multiplied)
    row = jax.lax.broadcasted_iota(jnp.int32, (tile_n, 1), 0)
    valid = (t * tile_n + row) < n_valid

    num_ref[...] += jnp.where(valid, wt * (lse - logit_t), 0.0)


def _vmem_limit_bytes() -> int:
    """Generation-aware VMEM limit: ~48 MiB on v7x (64 MiB physical per TC),
    ~96 MiB on v5e/v6e (128 MiB physical). Conservative fallback if the query fails."""
    cap = 64 * 1024 * 1024
    try:
        cap = int(pltpu.get_tpu_info().vmem_capacity_bytes)
    except Exception:
        pass
    return max(32 * 1024 * 1024, min(cap - 16 * 1024 * 1024, (cap * 3) // 4))


def cross_entropy_pallas(logits, target, weight=None, *, max_tile_n: int = 128 * 1024):
    """logits: (N, C), target: (N,) int, weight: (C,) or None -> scalar f32 loss.

    Matches torch.nn.functional.cross_entropy(..., weight=weight, reduction='mean').
    """
    N, C = logits.shape
    tgt = target.astype(jnp.int32)

    # per-sample weight w[y_i] (ones when unweighted) and torch's 'mean' denominator
    if weight is None:
        w_t = jnp.ones((N,), jnp.float32)
        den = jnp.float32(N)
    else:
        w_t = weight.astype(jnp.float32)[tgt]
        den = jnp.sum(w_t)

    # --- tile sizing: the biggest sample tile that fits the VMEM budget ----------
    vmem_limit = _vmem_limit_bytes()
    itemsize = jnp.dtype(logits.dtype).itemsize
    # double-buffered logits + target + weight blocks, plus the f32 accumulator
    per_sample_bytes = 2 * (C * itemsize + 4 + 4) + 4
    budget = int(vmem_limit * 0.7)          # headroom for outputs / internal scratch
    tile_cap = max(8, (budget // per_sample_bytes) // 8 * 8)
    tile_cap = min(tile_cap, max_tile_n)
    tile_n = N if N <= tile_cap else tile_cap     # single full-dim block whenever it fits
    n_tiles = pl.cdiv(N, tile_n)
    # TODO(synk): for vocab-scale C, add a class-tiled grid axis with an online
    # (rescaled) logsumexp so the per-block VMEM footprint stays bounded.

    kernel = functools.partial(_wce_kernel, n_valid=N)

    num = pl.pallas_call(
        kernel,
        out_shape=jax.ShapeDtypeStruct((tile_n, 1), jnp.float32),
        grid_spec=pltpu.PrefetchScalarGridSpec(
            num_scalar_prefetch=0,
            grid=(n_tiles,),
            in_specs=[
                pl.BlockSpec((tile_n, C), lambda t: (t, 0)),   # logits, natural (N, C) layout
                pl.BlockSpec((tile_n, 1), lambda t: (t, 0)),   # targets
                pl.BlockSpec((tile_n, 1), lambda t: (t, 0)),   # per-sample weights w[y_i]
            ],
            out_specs=pl.BlockSpec((tile_n, 1), lambda t: (0, 0)),  # VMEM-resident accumulator
        ),
        compiler_params=pltpu.CompilerParams(
            dimension_semantics=("arbitrary",),   # reduction axis into the resident output
            vmem_limit_bytes=vmem_limit,
        ),
    )(logits, tgt.reshape(N, 1), w_t.reshape(N, 1))

    # tiny final reduction over the per-sample partial sums
    return jnp.sum(num) / den


def cross_entropy_reference(logits, target, weight=None):
    """Pure-JAX mirror of torch.nn.functional.cross_entropy (reduction='mean')."""
    logp = jax.nn.log_softmax(logits.astype(jnp.float32), axis=-1)
    nll = -jnp.take_along_axis(logp, target[:, None], axis=-1)[:, 0]
    if weight is None:
        return jnp.mean(nll)
    w_t = weight[target]
    return jnp.sum(nll * w_t) / jnp.sum(w_t)


if __name__ == "__main__":
    # Small deterministic problem: batch=64, classes=10.
    N, C = 64, 10

    key = jax.random.PRNGKey(0)
    k1, k2 = jax.random.split(key, 2)
    logits = jax.random.normal(k1, (N, C), dtype=jnp.float32) * 2.0
    target = jax.random.randint(k2, (N,), 0, C, dtype=jnp.int32)

    # reweight_CE=True branch of the module: class-balanced "effective number" weights.
    cls_num_list = jnp.array([100., 90., 75., 60., 50., 40., 30., 20., 10., 5.],
                             dtype=jnp.float32)
    beta = 0.9999
    effective_num = 1.0 - jnp.power(beta, cls_num_list)
    per_cls_weights = (1.0 - beta) / effective_num
    per_cls_weights = per_cls_weights / jnp.sum(per_cls_weights) * C

    # weighted path (reweight_CE=True): torch divides by sum of per-sample weights
    loss_w = jax.block_until_ready(cross_entropy_pallas(logits, target, per_cls_weights))
    ref_w = cross_entropy_reference(logits, target, per_cls_weights)
    assert jnp.allclose(loss_w, ref_w, rtol=1e-5, atol=1e-5), (loss_w, ref_w)

    # unweighted path (reweight_CE=False, per_cls_weights=None)
    loss_u = jax.block_until_ready(cross_entropy_pallas(logits, target, None))
    ref_u = cross_entropy_reference(logits, target, None)
    assert jnp.allclose(loss_u, ref_u, rtol=1e-5, atol=1e-5), (loss_u, ref_u)

    print("KERNEL_OK")
</pallas_src>

<mosaic_0001>
module attributes {stable_mosaic.version = 11 : i64} {
  func.func @_wce_kernel(%arg0: i32, %arg1: memref<64x10xf32, #tpu.memory_space<vmem>>, %arg2: memref<64x1xi32, #tpu.memory_space<vmem>>, %arg3: memref<64x1xf32, #tpu.memory_space<vmem>>, %arg4: memref<64x1xf32, #tpu.memory_space<vmem>>) attributes {dimension_semantics = [#tpu.dimension_semantics<arbitrary>], iteration_bounds = array<i64: 1>, scalar_prefetch = 0 : i64, scratch_operands = 0 : i64, tpu.core_type = #tpu.core_type<tc>, window_params = [{transform_indices = @transform_0, window_bounds = array<i64: 64, 10>}, {transform_indices = @transform_1, window_bounds = array<i64: 64, 1>}, {transform_indices = @transform_2, window_bounds = array<i64: 64, 1>}, {pipeline_mode = #tpu.pipeline_mode<synchronous>, transform_indices = @transform_3, window_bounds = array<i64: 64, 1>}]} {
    %c0_i32 = arith.constant 0 : i32
    %0 = arith.cmpi eq, %arg0, %c0_i32 : i32
    %1 = arith.extui %0 : i1 to i32
    %c0_i32_0 = arith.constant 0 : i32
    %2 = arith.cmpi ne, %1, %c0_i32_0 : i32
    scf.if %2 {
      %cst_15 = arith.constant 0.000000e+00 : f32
      %35 = vector.broadcast %cst_15 : f32 to vector<64x1xf32>
      %c0_16 = arith.constant 0 : index
      %c0_17 = arith.constant 0 : index
      %36 = vector.load %arg4[%c0_16, %c0_17] : memref<64x1xf32, #tpu.memory_space<vmem>>, vector<64x1xf32>
      tpu.vector_store %arg4[%c0_16, %c0_17], %35 {strides = array<i32>} : memref<64x1xf32, #tpu.memory_space<vmem>>, vector<64x1xf32>,
    } else {
    }
    %c0 = arith.constant 0 : index
    %c0_1 = arith.constant 0 : index
    %3 = vector.load %arg1[%c0, %c0_1] : memref<64x10xf32, #tpu.memory_space<vmem>>, vector<64x10xf32>
    %c0_2 = arith.constant 0 : index
    %c0_3 = arith.constant 0 : index
    %4 = vector.load %arg2[%c0_2, %c0_3] : memref<64x1xi32, #tpu.memory_space<vmem>>, vector<64x1xi32>
    %c0_4 = arith.constant 0 : index
    %c0_5 = arith.constant 0 : index
    %5 = vector.load %arg3[%c0_4, %c0_5] : memref<64x1xf32, #tpu.memory_space<vmem>>, vector<64x1xf32>
    %cst = arith.constant dense<0xFF800000> : vector<64xf32>
    %6 = vector.multi_reduction <maximumf>, %3, %cst [1] : vector<64x10xf32> to vector<64xf32>
    %7 = vector.shape_cast %6 : vector<64xf32> to vector<64x1xf32>
    %8 = vector.broadcast %7 : vector<64x1xf32> to vector<64x10xf32>
    %9 = arith.subf %3, %8 : vector<64x10xf32>
    %10 = math.exp %9 : vector<64x10xf32>
    %cst_6 = arith.constant dense<0.000000e+00> : vector<64xf32>
    %11 = vector.multi_reduction <add>, %10, %cst_6 [1] : vector<64x10xf32> to vector<64xf32>
    %12 = vector.shape_cast %11 : vector<64xf32> to vector<64x1xf32>
    %13 = math.log %12 : vector<64x1xf32>
    %14 = arith.addf %7, %13 : vector<64x1xf32>
    %15 = tpu.iota {dimensions = array<i32: 1>} : vector<64x10xi32>
    %16 = vector.broadcast %4 : vector<64x1xi32> to vector<64x10xi32>
    %17 = arith.cmpi eq, %15, %16 : vector<64x10xi32>
    %cst_7 = arith.constant 0.000000e+00 : f32
    %18 = vector.broadcast %cst_7 : f32 to vector<64x10xf32>
    %19 = arith.select %17, %3, %18 : vector<64x10xi1>, vector<64x10xf32>
    %cst_8 = arith.constant dense<0.000000e+00> : vector<64xf32>
    %20 = vector.multi_reduction <add>, %19, %cst_8 [1] : vector<64x10xf32> to vector<64xf32>
    %21 = vector.shape_cast %20 : vector<64xf32> to vector<64x1xf32>
    %22 = tpu.iota {dimensions = array<i32: 0>} : vector<64x1xi32>
    %c64_i32 = arith.constant 64 : i32
    %23 = arith.muli %arg0, %c64_i32 : i32
    %24 = vector.broadcast %23 : i32 to vector<64x1xi32>
    %25 = arith.addi %24, %22 : vector<64x1xi32>
    %c64_i32_9 = arith.constant 64 : i32
    %26 = vector.broadcast %c64_i32_9 : i32 to vector<64x1xi32>
    %27 = arith.cmpi slt, %25, %26 : vector<64x1xi32>
    %c0_10 = arith.constant 0 : index
    %c0_11 = arith.constant 0 : index
    %28 = vector.load %arg4[%c0_10, %c0_11] : memref<64x1xf32, #tpu.memory_space<vmem>>, vector<64x1xf32>
    %29 = arith.subf %14, %21 : vector<64x1xf32>
    %30 = arith.mulf %5, %29 : vector<64x1xf32>
    %cst_12 = arith.constant 0.000000e+00 : f32
    %31 = vector.broadcast %cst_12 : f32 to vector<64x1xf32>
    %32 = arith.select %27, %30, %31 : vector<64x1xi1>, vector<64x1xf32>
    %33 = arith.addf %28, %32 : vector<64x1xf32>
    %c0_13 = arith.constant 0 : index
    %c0_14 = arith.constant 0 : index
    %34 = vector.load %arg4[%c0_13, %c0_14] : memref<64x1xf32, #tpu.memory_space<vmem>>, vector<64x1xf32>
    tpu.vector_store %arg4[%c0_13, %c0_14], %33 {strides = array<i32>} : memref<64x1xf32, #tpu.memory_space<vmem>>, vector<64x1xf32>,
    return
  }
  func.func @transform_0(%arg0: i32) -> (i32, i32) {
    %c0_i32 = arith.constant 0 : i32
    %c0_i32_0 = arith.constant 0 : i32
    return %arg0, %c0_i32 : i32, i32
  }
  func.func @transform_1(%arg0: i32) -> (i32, i32) {
    %c0_i32 = arith.constant 0 : i32
    %c0_i32_0 = arith.constant 0 : i32
    return %arg0, %c0_i32 : i32, i32
  }
  func.func @transform_2(%arg0: i32) -> (i32, i32) {
    %c0_i32 = arith.constant 0 : i32
    %c0_i32_0 = arith.constant 0 : i32
    return %arg0, %c0_i32 : i32, i32
  }
  func.func @transform_3(%arg0: i32) -> (i32, i32) {
    %c0_i32 = arith.constant 0 : i32
    %c0_i32_0 = arith.constant 0 : i32
    %c0_i32_1 = arith.constant 0 : i32
    return %c0_i32, %c0_i32_0 : i32, i32
  }
}

</mosaic_0001>

<llo_original>
// kernel: tpu_custom_call.1
$region0: #{tpu_custom_call.1}
  #allocation0 [shape = 'u32[]', space=smem, size = 0x4, offset = 0x4, fixed_abs, tag = 'smem constant byte address 0x4 - core index']
  #allocation1 [shape = 'u32[144,128]{1,0:T(1,128)}', space=vmem, size = 0x12000, scoped, tag = 'internal scratch']
  %s0 = inlined_call_operand.vmem [shape: f32[64,10], index: 0, kind: input, shape index: {}]
  %s1 = inlined_call_operand.vmem [shape: s32[64,1], index: 1, kind: input, shape index: {}]
  %s2 = inlined_call_operand.vmem [shape: f32[64,1], index: 2, kind: input, shape index: {}]
  %s3 = inlined_call_operand.vmem [shape: f32[64,1], index: 3, kind: output, shape index: {}]
  %s4 = sld [smem:[#allocation0]]
  $region26: #{tpu_custom_call.1} parent=0
    _
  %s6 = ssub.s32 1, %s4
  %s7 = scalar_select 0, %s6, %s4
  // Predicated region
  $region2: #{tpu_custom_call.1} parent=0 // pred_check
    _
  $region3: #{tpu_custom_call.1} parent=0 // pred_check_branch
    %9 = sbr.rel (0) target = $region5
  $region4: #{tpu_custom_call.1} parent=0 // pred_region
    _
  $region5: #{tpu_custom_call.1} parent=0 // pred_fallthru
    _
  // Predicated region
  $region6: #{tpu_custom_call.1} parent=0 // pred_check
    _
  $region7: #{tpu_custom_call.1} parent=0 // pred_check_branch
    %11 = sbr.rel (0) target = $region9
  $region8: #{tpu_custom_call.1} parent=0 // pred_region
    _
  $region9: #{tpu_custom_call.1} parent=0 // pred_fallthru
    _
  // Predicated region
  $region10: #{tpu_custom_call.1} parent=0 // pred_check
    _
  $region11: #{tpu_custom_call.1} parent=0 // pred_check_branch
    %13 = sbr.rel (0) target = $region13
  $region12: #{tpu_custom_call.1} parent=0 // pred_region
    _
  $region13: #{tpu_custom_call.1} parent=0 // pred_fallthru
    _
  %p14 = scmp.eq.s32.totalorder 0, 0
  // Predicated region
  $region14: #{tpu_custom_call.1} parent=0 // pred_check
    %p15 = pneg %p14
  $region15: #{tpu_custom_call.1} parent=0 // pred_check_branch
    %17 = sbr.rel (%p15) target = $region17
  $region16: #{tpu_custom_call.1} parent=0 // pred_region
    %vm18 = vcmask 7168
    %19 = vst.msk [vmem:[%s3] sm:$0xff] %vm18, 0.0
    %20 = vst.msk [vmem:[%s3 + $0x8] sm:$0xff] %vm18, 0.0
    %21 = vst.msk [vmem:[%s3 + $0x10] sm:$0xff] %vm18, 0.0
    %22 = vst.msk [vmem:[%s3 + $0x18] sm:$0xff] %vm18, 0.0
    %23 = vst.msk [vmem:[%s3 + $0x20] sm:$0xff] %vm18, 0.0
    %24 = vst.msk [vmem:[%s3 + $0x28] sm:$0xff] %vm18, 0.0
    %25 = vst.msk [vmem:[%s3 + $0x30] sm:$0xff] %vm18, 0.0
    %26 = vst.msk [vmem:[%s3 + $0x38] sm:$0xff] %vm18, 0.0
  $region17: #{tpu_custom_call.1} parent=0 // pred_fallthru
    _
  %v27 = vld [vmem:[%s0] sm:$0xff]
  %v28 = vld [vmem:[%s0 + $0x8] sm:$0xff]
  %v29 = vld [vmem:[%s0 + $0x10] sm:$0xff]
  %v30 = vld [vmem:[%s0 + $0x18] sm:$0xff]
  %v31 = vld [vmem:[%s0 + $0x20] sm:$0xff]
  %v32 = vld [vmem:[%s0 + $0x28] sm:$0xff]
  %v33 = vld [vmem:[%s0 + $0x30] sm:$0xff]
  %v34 = vld [vmem:[%s0 + $0x38] sm:$0xff]
  %v35 = vld [vmem:[%s1] sm:$0xff]
  %v36 = vld [vmem:[%s1 + $0x8] sm:$0xff]
  %v37 = vld [vmem:[%s1 + $0x10] sm:$0xff]
  %v38 = vld [vmem:[%s1 + $0x18] sm:$0xff]
  %v39 = vld [vmem:[%s1 + $0x20] sm:$0xff]
  %v40 = vld [vmem:[%s1 + $0x28] sm:$0xff]
  %v41 = vld [vmem:[%s1 + $0x30] sm:$0xff]
  %v42 = vld [vmem:[%s1 + $0x38] sm:$0xff]
  %v43 = vld [vmem:[%s2] sm:$0xff]
  %v44 = vld [vmem:[%s2 + $0x8] sm:$0xff]
  %v45 = vld [vmem:[%s2 + $0x10] sm:$0xff]
  %v46 = vld [vmem:[%s2 + $0x18] sm:$0xff]
  %v47 = vld [vmem:[%s2 + $0x20] sm:$0xff]
  %v48 = vld [vmem:[%s2 + $0x28] sm:$0xff]
  %v49 = vld [vmem:[%s2 + $0x30] sm:$0xff]
  %v50 = vld [vmem:[%s2 + $0x38] sm:$0xff]
  %vm51 = vcmask 80896
  %v52 = vsel %vm51, %v27, -inf
  %53 = vmax.xlane.f32.xlu0 %v52
  %v54 = vpop.xlane.xlu0 %53
  %v55 = vsel %vm51, %v28, -inf
  %56 = vmax.xlane.f32.xlu0 %v55
  %v57 = vpop.xlane.xlu0 %56
  %v58 = vsel %vm51, %v29, -inf
  %59 = vmax.xlane.f32.xlu0 %v58
  %v60 = vpop.xlane.xlu0 %59
  %v61 = vsel %vm51, %v30, -inf
  %62 = vmax.xlane.f32.xlu0 %v61
  %v63 = vpop.xlane.xlu0 %62
  %v64 = vsel %vm51, %v31, -inf
  %65 = vmax.xlane.f32.xlu0 %v64
  %v66 = vpop.xlane.xlu0 %65
  %v67 = vsel %vm51, %v32, -inf
  %68 = vmax.xlane.f32.xlu0 %v67
  %v69 = vpop.xlane.xlu0 %68
  %v70 = vsel %vm51, %v33, -inf
  %71 = vmax.xlane.f32.xlu0 %v70
  %v72 = vpop.xlane.xlu0 %71
  %v73 = vsel %vm51, %v34, -inf
  %74 = vmax.xlane.f32.xlu0 %v73
  %v75 = vpop.xlane.xlu0 %74
  %v76 = vsub.f32 %v27, %v54
  %v77 = vsub.f32 %v28, %v57
  %v78 = vsub.f32 %v29, %v60
  %v79 = vsub.f32 %v30, %v63
  %v80 = vsub.f32 %v31, %v66
  %v81 = vsub.f32 %v32, %v69
  %v82 = vsub.f32 %v33, %v72
  %v83 = vsub.f32 %v34, %v75
  %v84 = vmul.f32 %v76, 1.442695
  %v85 = vpow.pop %v84
  %v86 = vmul.f32 %v77, 1.442695
  %v87 = vpow.pop %v86
  %v88 = vmul.f32 %v78, 1.442695
  %v89 = vpow.pop %v88
  %v90 = vmul.f32 %v79, 1.442695
  %v91 = vpow.pop %v90
  %v92 = vmul.f32 %v80, 1.442695
  %v93 = vpow.pop %v92
  %v94 = vmul.f32 %v81, 1.442695
  %v95 = vpow.pop %v94
  %v96 = vmul.f32 %v82, 1.442695
  %v97 = vpow.pop %v96
  %v98 = vmul.f32 %v83, 1.442695
  %v99 = vpow.pop %v98
  %v100 = vsel %vm51, %v85, 0.0
  %101 = vadd.xlane.f32.xlu0 %v100
  %v102 = vpop.xlane.xlu0 %101
  %v103 = vsel %vm51, %v87, 0.0
  %104 = vadd.xlane.f32.xlu0 %v103
  %v105 = vpop.xlane.xlu0 %104
  %v106 = vsel %vm51, %v89, 0.0
  %107 = vadd.xlane.f32.xlu0 %v106
  %v108 = vpop.xlane.xlu0 %107
  %v109 = vsel %vm51, %v91, 0.0
  %110 = vadd.xlane.f32.xlu0 %v109
  %v111 = vpop.xlane.xlu0 %110
  %v112 = vsel %vm51, %v93, 0.0
  %113 = vadd.xlane.f32.xlu0 %v112
  %v114 = vpop.xlane.xlu0 %113
  %v115 = vsel %vm51, %v95, 0.0
  %116 = vadd.xlane.f32.xlu0 %v115
  %v117 = vpop.xlane.xlu0 %116
  %v118 = vsel %vm51, %v97, 0.0
  %119 = vadd.xlane.f32.xlu0 %v118
  %v120 = vpop.xlane.xlu0 %119
  %v121 = vsel %vm51, %v99, 0.0
  %122 = vadd.xlane.f32.xlu0 %v121
  %v123 = vpop.xlane.xlu0 %122
  %v124 = vlog2.pop %v102
  %v125 = vmul.f32 %v124, 0.6931472
  %v126 = vlog2.pop %v105
  %v127 = vmul.f32 %v126, 0.6931472
  %v128 = vlog2.pop %v108
  %v129 = vmul.f32 %v128, 0.6931472
  %v130 = vlog2.pop %v111
  %v131 = vmul.f32 %v130, 0.6931472
  %v132 = vlog2.pop %v114
  %v133 = vmul.f32 %v132, 0.6931472
  %v134 = vlog2.pop %v117
  %v135 = vmul.f32 %v134, 0.6931472
  %v136 = vlog2.pop %v120
  %v137 = vmul.f32 %v136, 0.6931472
  %v138 = vlog2.pop %v123
  %v139 = vmul.f32 %v138, 0.6931472
  %v140 = vadd.f32 %v54, %v125
  %v141 = vadd.f32 %v57, %v127
  %v142 = vadd.f32 %v60, %v129
  %v143 = vadd.f32 %v63, %v131
  %v144 = vadd.f32 %v66, %v133
  %v145 = vadd.f32 %v69, %v135
  %v146 = vadd.f32 %v72, %v137
  %v147 = vadd.f32 %v75, %v139
  %v148 = vlaneseq
  %v149 = vand.u32 %v148, 127
  %150 = vset.pattern.permute.xlu0 0
  %151 = vperm.xlu0 %150, %v35
  %v152 = vpop.permute.xlu0 %151
  %153 = vset.pattern.permute.xlu0 0
  %154 = vperm.xlu0 %153, %v36
  %v155 = vpop.permute.xlu0 %154
  %156 = vset.pattern.permute.xlu0 0
  %157 = vperm.xlu0 %156, %v37
  %v158 = vpop.permute.xlu0 %157
  %159 = vset.pattern.permute.xlu0 0
  %160 = vperm.xlu0 %159, %v38
  %v161 = vpop.permute.xlu0 %160
  %162 = vset.pattern.permute.xlu0 0
  %163 = vperm.xlu0 %162, %v39
  %v164 = vpop.permute.xlu0 %163
  %165 = vset.pattern.permute.xlu0 0
  %166 = vperm.xlu0 %165, %v40
  %v167 = vpop.permute.xlu0 %166
  %168 = vset.pattern.permute.xlu0 0
  %169 = vperm.xlu0 %168, %v41
  %v170 = vpop.permute.xlu0 %169
  %171 = vset.pattern.permute.xlu0 0
  %172 = vperm.xlu0 %171, %v42
  %v173 = vpop.permute.xlu0 %172
  %vm174 = vcmp.eq.s32.totalorder %v149, %v152
  %vm175 = vcmp.eq.s32.totalorder %v149, %v155
  %vm176 = vcmp.eq.s32.totalorder %v149, %v158
  %vm177 = vcmp.eq.s32.totalorder %v149, %v161
  %vm178 = vcmp.eq.s32.totalorder %v149, %v164
  %vm179 = vcmp.eq.s32.totalorder %v149, %v167
  %vm180 = vcmp.eq.s32.totalorder %v149, %v170
  %vm181 = vcmp.eq.s32.totalorder %v149, %v173
  %v182 = vsel %vm174, %v27, 0.0
  %v183 = vsel %vm175, %v28, 0.0
  %v184 = vsel %vm176, %v29, 0.0
  %v185 = vsel %vm177, %v30, 0.0
  %v186 = vsel %vm178, %v31, 0.0
  %v187 = vsel %vm179, %v32, 0.0
  %v188 = vsel %vm180, %v33, 0.0
  %v189 = vsel %vm181, %v34, 0.0
  %v190 = vsel %vm51, %v182, 0.0
  %191 = vadd.xlane.f32.xlu0 %v190
  %v192 = vpop.xlane.xlu0 %191
  %v193 = vsel %vm51, %v183, 0.0
  %194 = vadd.xlane.f32.xlu0 %v193
  %v195 = vpop.xlane.xlu0 %194
  %v196 = vsel %vm51, %v184, 0.0
  %197 = vadd.xlane.f32.xlu0 %v196
  %v198 = vpop.xlane.xlu0 %197
  %v199 = vsel %vm51, %v185, 0.0
  %200 = vadd.xlane.f32.xlu0 %v199
  %v201 = vpop.xlane.xlu0 %200
  %v202 = vsel %vm51, %v186, 0.0
  %203 = vadd.xlane.f32.xlu0 %v202
  %v204 = vpop.xlane.xlu0 %203
  %v205 = vsel %vm51, %v187, 0.0
  %206 = vadd.xlane.f32.xlu0 %v205
  %v207 = vpop.xlane.xlu0 %206
  %v208 = vsel %vm51, %v188, 0.0
  %209 = vadd.xlane.f32.xlu0 %v208
  %v210 = vpop.xlane.xlu0 %209
  %v211 = vsel %vm51, %v189, 0.0
  %212 = vadd.xlane.f32.xlu0 %v211
  %v213 = vpop.xlane.xlu0 %212
  %v214 = vlaneseq
  %v215 = vshrl.u32 %v214, 7
  %v216 = vadd.s32 %v215, 8
  %v217 = vadd.s32 %v215, 16
  %v218 = vadd.s32 %v215, 24
  %v219 = vadd.s32 %v215, 32
  %v220 = vadd.s32 %v215, 40
  %v221 = vadd.s32 %v215, 48
  %v222 = vadd.s32 %v215, 56
  %s223 = smul.u32 0, 64
  %v224 = vstv %s223
  %v225 = vadd.s32 %v224, %v215
  %v226 = vadd.s32 %v224, %v216
  %v227 = vadd.s32 %v224, %v217
  %v228 = vadd.s32 %v224, %v218
  %v229 = vadd.s32 %v224, %v219
  %v230 = vadd.s32 %v224, %v220
  %v231 = vadd.s32 %v224, %v221
  %v232 = vadd.s32 %v224, %v222
  %vm233 = vcmp.lt.s32.totalorder %v225, 64
  %vm234 = vcmp.lt.s32.totalorder %v226, 64
  %vm235 = vcmp.lt.s32.totalorder %v227, 64
  %vm236 = vcmp.lt.s32.totalorder %v228, 64
  %vm237 = vcmp.lt.s32.totalorder %v229, 64
  %vm238 = vcmp.lt.s32.totalorder %v230, 64
  %vm239 = vcmp.lt.s32.totalorder %v231, 64
  %vm240 = vcmp.lt.s32.totalorder %v232, 64
  %v241 = vld [vmem:[%s3] sm:$0xff]
  %v242 = vld [vmem:[%s3 + $0x8] sm:$0xff]
  %v243 = vld [vmem:[%s3 + $0x10] sm:$0xff]
  %v244 = vld [vmem:[%s3 + $0x18] sm:$0xff]
  %v245 = vld [vmem:[%s3 + $0x20] sm:$0xff]
  %v246 = vld [vmem:[%s3 + $0x28] sm:$0xff]
  %v247 = vld [vmem:[%s3 + $0x30] sm:$0xff]
  %v248 = vld [vmem:[%s3 + $0x38] sm:$0xff]
  %v249 = vsub.f32 %v140, %v192
  %v250 = vsub.f32 %v141, %v195
  %v251 = vsub.f32 %v142, %v198
  %v252 = vsub.f32 %v143, %v201
  %v253 = vsub.f32 %v144, %v204
  %v254 = vsub.f32 %v145, %v207
  %v255 = vsub.f32 %v146, %v210
  %v256 = vsub.f32 %v147, %v213
  %v257 = vmul.f32 %v43, %v249
  %v258 = vmul.f32 %v44, %v250
  %v259 = vmul.f32 %v45, %v251
  %v260 = vmul.f32 %v46, %v252
  %v261 = vmul.f32 %v47, %v253
  %v262 = vmul.f32 %v48, %v254
  %v263 = vmul.f32 %v49, %v255
  %v264 = vmul.f32 %v50, %v256
  %v265 = vsel %vm233, %v257, 0.0
  %v266 = vsel %vm234, %v258, 0.0
  %v267 = vsel %vm235, %v259, 0.0
  %v268 = vsel %vm236, %v260, 0.0
  %v269 = vsel %vm237, %v261, 0.0
  %v270 = vsel %vm238, %v262, 0.0
  %v271 = vsel %vm239, %v263, 0.0
  %v272 = vsel %vm240, %v264, 0.0
  %v273 = vadd.f32 %v241, %v265
  %v274 = vadd.f32 %v242, %v266
  %v275 = vadd.f32 %v243, %v267
  %v276 = vadd.f32 %v244, %v268
  %v277 = vadd.f32 %v245, %v269
  %v278 = vadd.f32 %v246, %v270
  %v279 = vadd.f32 %v247, %v271
  %v280 = vadd.f32 %v248, %v272
  %vm281 = vcmask 7168
  %282 = vst.msk [vmem:[%s3] sm:$0xff] %vm281, %v273
  %283 = vst.msk [vmem:[%s3 + $0x8] sm:$0xff] %vm281, %v274
  %284 = vst.msk [vmem:[%s3 + $0x10] sm:$0xff] %vm281, %v275
  %285 = vst.msk [vmem:[%s3 + $0x18] sm:$0xff] %vm281, %v276
  %286 = vst.msk [vmem:[%s3 + $0x20] sm:$0xff] %vm281, %v277
  %287 = vst.msk [vmem:[%s3 + $0x28] sm:$0xff] %vm281, %v278
  %288 = vst.msk [vmem:[%s3 + $0x30] sm:$0xff] %vm281, %v279
  %289 = vst.msk [vmem:[%s3 + $0x38] sm:$0xff] %vm281, %v280
  // Predicated region
  $region18: #{tpu_custom_call.1} parent=0 // pred_check
    _
  $region19: #{tpu_custom_call.1} parent=0 // pred_check_branch
    %291 = sbr.rel (0) target = $region21
  $region20: #{tpu_custom_call.1} parent=0 // pred_region
    _
  $region21: #{tpu_custom_call.1} parent=0 // pred_fallthru
    _
  // Predicated region
  $region22: #{tpu_custom_call.1} parent=0 // pred_check
    _
  $region23: #{tpu_custom_call.1} parent=0 // pred_check_branch
    %293 = sbr.rel (0) target = $region25
  $region24: #{tpu_custom_call.1} parent=0 // pred_region
    _
  $region25: #{tpu_custom_call.1} parent=0 // pred_fallthru
    _

</llo_original>
